<compile_context>
chip_gen: v7x
topology: tpu7x:2x2x1
jax: 0.10.0
libtpu: 0.0.40
codegen_flags: <defaults>
</compile_context>

<pallas_src>
import jax
import jax.numpy as jnp
from jax.experimental import pallas as pl
from jax.experimental.pallas import tpu as pltpu

_MiB = 1024 * 1024


# --------------------------- device capability info --------------------------

def _vmem_capacity_bytes():
    """Physical per-core VMEM, with a per-generation fallback (not a blanket
    64 MiB, which would silently push 128 MiB v5e/v6e parts onto the
    3x-traffic two-pass path if the TPU-info query fails)."""
    try:
        cap = getattr(pltpu.get_tpu_info(), "vmem_capacity_bytes", None)
        if cap:
            return int(cap)
    except Exception:
        pass
    try:
        kind = jax.devices()[0].device_kind.lower()
    except Exception:
        kind = ""
    if "v7" in kind or "7x" in kind:
        return 64 * _MiB
    if kind:
        return 128 * _MiB          # v5e / v6e / v5p class parts
    return 64 * _MiB               # unknown: be conservative


def _multi_tensorcore():
    """True if this chip exposes >1 TensorCore to one program (v7x)."""
    try:
        kind = jax.devices()[0].device_kind.lower()
        return ("v7" in kind) or ("7x" in kind)
    except Exception:
        return False


# One-time (per process) probe for pl.Buffered / pipeline_mode support.  This
# replaces the previous per-call try/except + block_until_ready, which forced
# a device sync on every call and silently swallowed genuine compile failures.
_PIPELINE_MODE_OK = None


def _probe_kernel(x_ref, o_ref):
    o_ref[...] = x_ref[...] + 1.0


def _pipeline_mode_supported():
    global _PIPELINE_MODE_OK
    if _PIPELINE_MODE_OK is None:
        try:
            x = jnp.arange(4 * 8 * 128, dtype=jnp.float32).reshape(4, 8, 128)
            fn = pl.pallas_call(
                _probe_kernel,
                out_shape=jax.ShapeDtypeStruct(x.shape, x.dtype),
                grid=(4,),
                in_specs=[pl.BlockSpec((1, 8, 128), lambda i: (i, 0, 0),
                                       pipeline_mode=pl.Buffered(1))],
                out_specs=pl.BlockSpec((1, 8, 128), lambda i: (i, 0, 0),
                                       pipeline_mode=pl.Buffered(1)),
                compiler_params=pltpu.CompilerParams(
                    dimension_semantics=("parallel",)),
            )
            out = jax.block_until_ready(fn(x))
            _PIPELINE_MODE_OK = bool(jnp.array_equal(out, x + 1.0))
        except Exception:
            _PIPELINE_MODE_OK = False
    return _PIPELINE_MODE_OK


# ----------------------------- fused single-pass ----------------------------

def _se_fused_kernel(x_ref, w1t_ref, b1_ref, w2_ref, b2_ref, o_ref):
    # x_ref: (1, C, HW)  w1t: (C, Cr)  b1: (1, Cr)  w2: (C, Cr)  b2: (C, 1)
    # adaptive_avg_pool2d(x, 1): f32 accumulation; the cast happens inside the
    # reduction so no full-slab f32 copy stays live until the scale.
    pooled = jnp.mean(x_ref[0].astype(jnp.float32), axis=1, keepdims=True)   # (C, 1)
    # fc1 + ReLU on VPU/XLU (broadcast-mul + sublane reduce); a (Cr,C)@(C,1)
    # MXU matvec would be <1% MXU utilisation.
    h = jnp.sum(w1t_ref[...] * pooled, axis=0, keepdims=True) + b1_ref[...]  # (1, Cr)
    h = jnp.maximum(h, 0.0)
    # fc2 + sigmoid (lane reduce).
    s = jnp.sum(w2_ref[...] * h, axis=1, keepdims=True) + b2_ref[...]        # (C, 1)
    s = jax.nn.sigmoid(s)
    # Per-channel gate, multiplied in the I/O dtype (no full-slab f32 round
    # trip in the epilogue).
    o_ref[0] = (x_ref[0] * s.astype(x_ref.dtype)).astype(o_ref.dtype)


def _se_fused(x3, w1t, b1r, w2f, b2c, vmem_cap, buffered_ok):
    N, C, HW = x3.shape
    Cr = w1t.shape[1]
    itemsize = x3.dtype.itemsize
    weight_bytes = (2 * C * Cr + C + Cr) * 4

    if buffered_ok:
        # Weights never change across the grid, and the out slab tolerates
        # single-buffering (kernel is HBM-bound; DMA-in of step b+1 still
        # overlaps the out writeback of step b): ~3 resident slabs, not 4.
        def wspec(shape):
            return pl.BlockSpec(shape, lambda b: (0, 0),
                                pipeline_mode=pl.Buffered(1))
        out_spec = pl.BlockSpec((1, C, HW), lambda b: (b, 0, 0),
                                pipeline_mode=pl.Buffered(1))
        n_slab, n_wbuf = 3, 1
    else:
        def wspec(shape):
            return pl.BlockSpec(shape, lambda b: (0, 0))
        out_spec = pl.BlockSpec((1, C, HW), lambda b: (b, 0, 0))
        n_slab, n_wbuf = 4, 2

    # No in-kernel full-slab f32 temporaries remain, so this is the real
    # footprint; keep >= 8 MiB headroom below the scoped limit.
    need = n_slab * C * HW * itemsize + n_wbuf * weight_bytes
    limit = int(min(max(need + 8 * _MiB, 16 * _MiB), vmem_cap))
    return pl.pallas_call(
        _se_fused_kernel,
        out_shape=jax.ShapeDtypeStruct((N, C, HW), x3.dtype),
        grid_spec=pltpu.PrefetchScalarGridSpec(
            num_scalar_prefetch=0,
            grid=(N,),
            in_specs=[
                pl.BlockSpec((1, C, HW), lambda b: (b, 0, 0)),  # x (double-buf)
                wspec((C, Cr)),    # fc1 weight (pre-transposed)
                wspec((1, Cr)),    # fc1 bias
                wspec((C, Cr)),    # fc2 weight
                wspec((C, 1)),     # fc2 bias
            ],
            out_specs=out_spec,
        ),
        compiler_params=pltpu.CompilerParams(
            dimension_semantics=("parallel",),   # shards N across TCs on v7x
            vmem_limit_bytes=limit),
    )(x3, w1t, b1r, w2f, b2c)


# ------------------------- two-pass pool + scale path ------------------------

def _make_pool_kernel(hw, thw):
    def kernel(x_ref, psum_ref):
        t = pl.program_id(1)

        @pl.when(t == 0)
        def _():
            psum_ref[...] = jnp.zeros_like(psum_ref)

        xf = x_ref[0].astype(jnp.float32)                    # (C, thw)
        if hw % thw != 0:
            # Tail tile: mask out-of-range lanes before accumulating.
            col = jax.lax.broadcasted_iota(jnp.int32, xf.shape, 1) + t * thw
            xf = jnp.where(col < hw, xf, 0.0)
        psum_ref[0] += jnp.sum(xf, axis=1, keepdims=True)
    return kernel


def _scale_kernel(x_ref, s_ref, o_ref):
    # Pure streaming: multiply in the I/O dtype (no full-tile f32 round trip,
    # keeps the kernel DMA-bound on v7x and cheap on v5e's VPU).
    o_ref[0] = (x_ref[0] * s_ref[0].astype(x_ref.dtype)).astype(o_ref.dtype)


def _se_two_pass(x3, w1, b1, w2, b2, vmem_cap, buffered_ok, hw_tile=None):
    N, C, HW = x3.shape
    itemsize = x3.dtype.itemsize

    if hw_tile is not None:
        thw = int(hw_tile)
    else:
        # HBM roofline saturates around 2-8 MiB tiles; "as big as fits" only
        # hurts pipeline overlap at small N and wastes VMEM.
        max_thw = max(128, (4 * _MiB) // max(1, C * itemsize))
        if HW <= max_thw:
            thw = HW
        else:
            step = 512 if max_thw >= 512 else 128
            thw = (max_thw // step) * step
    n_t = pl.cdiv(HW, thw)
    limit = int(min(max(4 * C * thw * itemsize + 8 * _MiB, 16 * _MiB), vmem_cap))

    # Pass 1: per-(batch, channel) spatial sums; f32 accumulator stays
    # resident in VMEM across the HW-tile (reduction, innermost) grid axis.
    # Its output is tiny, so give the input deeper buffering when available
    # to hide DMA latency behind its very short compute.
    if buffered_ok and n_t >= 3:
        p1_in = pl.BlockSpec((1, C, thw), lambda b, t: (b, 0, t),
                             pipeline_mode=pl.Buffered(3))
    else:
        p1_in = pl.BlockSpec((1, C, thw), lambda b, t: (b, 0, t))

    psum = pl.pallas_call(
        _make_pool_kernel(HW, thw),
        out_shape=jax.ShapeDtypeStruct((N, C, 1), jnp.float32),
        grid_spec=pltpu.PrefetchScalarGridSpec(
            num_scalar_prefetch=0,
            grid=(N, n_t),
            in_specs=[p1_in],
            out_specs=pl.BlockSpec((1, C, 1), lambda b, t: (b, 0, 0)),
        ),
        compiler_params=pltpu.CompilerParams(
            dimension_semantics=("parallel", "arbitrary"),
            vmem_limit_bytes=limit),
    )(x3)

    # Tiny gate: lane-dense (N,C)@(C,Cr) matmuls, leave them to XLA.
    pooled = psum[:, :, 0] * (1.0 / HW)                      # (N, C) f32
    h = jax.nn.relu(jnp.dot(pooled, w1.T.astype(jnp.float32),
                            precision=jax.lax.Precision.HIGHEST)
                    + b1.astype(jnp.float32))
    s = jax.nn.sigmoid(jnp.dot(h, w2.T.astype(jnp.float32),
                               precision=jax.lax.Precision.HIGHEST)
                       + b2.astype(jnp.float32))
    s3 = s.reshape(N, C, 1)

    # Pass 2: pure per-channel scale; both grid axes parallel so both v7x
    # TensorCores stay busy even at N == 1.
    out = pl.pallas_call(
        _scale_kernel,
        out_shape=jax.ShapeDtypeStruct((N, C, HW), x3.dtype),
        grid_spec=pltpu.PrefetchScalarGridSpec(
            num_scalar_prefetch=0,
            grid=(N, n_t),
            in_specs=[pl.BlockSpec((1, C, thw), lambda b, t: (b, 0, t)),
                      pl.BlockSpec((1, C, 1), lambda b, t: (b, 0, 0))],
            out_specs=pl.BlockSpec((1, C, thw), lambda b, t: (b, 0, t)),
        ),
        compiler_params=pltpu.CompilerParams(
            dimension_semantics=("parallel", "parallel"),
            vmem_limit_bytes=limit),
    )(x3, s3)
    return out


# ----------------------------------- API -------------------------------------

def se_block(x, w1, b1, w2, b2, *, force_two_pass=False, hw_tile=None):
    """SEBlock forward.  x:(N,C,H,W)  w1:(Cr,C)  b1:(Cr,)  w2:(C,Cr)  b2:(C,)."""
    N, C, H, W = x.shape
    Cr = w1.shape[0]
    HW = H * W
    x3 = x.reshape(N, C, HW)
    itemsize = x.dtype.itemsize
    vmem_cap = _vmem_capacity_bytes()
    buffered_ok = _pipeline_mode_supported()

    # Fused single-read path: double-buffered x slabs + (single-buffered when
    # supported) out slab and weight copies must fit VMEM with >= 8 MiB
    # headroom.  The kernel holds no full-slab f32 temporaries, so this is
    # the real footprint.
    weight_bytes = (2 * C * Cr + C + Cr) * 4
    n_slab = 3 if buffered_ok else 4
    n_wbuf = 1 if buffered_ok else 2
    fused_need = n_slab * C * HW * itemsize + n_wbuf * weight_bytes
    use_fused = (not force_two_pass) and (fused_need + 8 * _MiB <= vmem_cap)

    # On a 2-TensorCore part (v7x), grid=(N,) with N == 1 leaves one core
    # idle; the HW-tiled two-pass path keeps both busy and wins despite the
    # extra pooling read.
    if use_fused and N == 1 and HW >= 1024 and _multi_tensorcore():
        use_fused = False

    if use_fused:
        w1t = w1.T.astype(jnp.float32)               # (C, Cr)
        b1r = b1.reshape(1, Cr).astype(jnp.float32)
        w2f = w2.astype(jnp.float32)                 # (C, Cr)
        b2c = b2.reshape(C, 1).astype(jnp.float32)
        out = _se_fused(x3, w1t, b1r, w2f, b2c, vmem_cap, buffered_ok)
    else:
        out = _se_two_pass(x3, w1, b1, w2, b2, vmem_cap, buffered_ok,
                           hw_tile=hw_tile)
    return out.reshape(N, C, H, W)


def _reference(x, w1, b1, w2, b2):
    # Pure-JAX mirror of the PyTorch forward (full-precision matmuls so it
    # matches the kernel's f32 gate math).
    y = jnp.mean(x, axis=(2, 3))
    y = jax.nn.relu(jnp.dot(y, w1.T, precision=jax.lax.Precision.HIGHEST) + b1)
    y = jax.nn.sigmoid(jnp.dot(y, w2.T, precision=jax.lax.Precision.HIGHEST) + b2)
    return x * y[:, :, None, None]


if __name__ == "__main__":
    N, C, H, W = 2, 4, 16, 16
    reduction = 1
    Cr = C // reduction

    key = jax.random.PRNGKey(0)
    kx, kx2, k1w, k1b, k2w, k2b = jax.random.split(key, 6)

    x = jax.random.normal(kx, (N, C, H, W), dtype=jnp.float32)

    # nn.Linear-style U(-1/sqrt(fan_in), 1/sqrt(fan_in)) init.
    lim1 = 1.0 / float(C) ** 0.5
    w1 = jax.random.uniform(k1w, (Cr, C), jnp.float32, -lim1, lim1)
    b1 = jax.random.uniform(k1b, (Cr,), jnp.float32, -lim1, lim1)
    lim2 = 1.0 / float(Cr) ** 0.5
    w2 = jax.random.uniform(k2w, (C, Cr), jnp.float32, -lim2, lim2)
    b2 = jax.random.uniform(k2b, (C,), jnp.float32, -lim2, lim2)

    # Fused single-pass path.
    out = jax.block_until_ready(se_block(x, w1, b1, w2, b2))
    ref = _reference(x, w1, b1, w2, b2)
    assert out.shape == (N, C, H, W)
    assert float(jnp.max(jnp.abs(out - ref))) < 1e-5

    # Two-pass fallback path, including a tail HW tile that is not a multiple
    # of 128 to exercise the pooling mask.
    x2 = jax.random.normal(kx2, (N, C, 10, 16), dtype=jnp.float32)   # HW = 160
    out2 = jax.block_until_ready(
        se_block(x2, w1, b1, w2, b2, force_two_pass=True, hw_tile=128))
    ref2 = _reference(x2, w1, b1, w2, b2)
    assert out2.shape == x2.shape
    assert float(jnp.max(jnp.abs(out2 - ref2))) < 1e-5

    print("KERNEL_OK")
</pallas_src>

<mosaic_0001>
module attributes {stable_mosaic.version = 11 : i64} {
  func.func @_probe_kernel(%arg0: i32, %arg1: memref<1x8x128xf32, #tpu.memory_space<vmem>>, %arg2: memref<1x8x128xf32, #tpu.memory_space<vmem>>) attributes {dimension_semantics = [#tpu.dimension_semantics<parallel>], iteration_bounds = array<i64: 4>, scalar_prefetch = 0 : i64, scratch_operands = 0 : i64, tpu.core_type = #tpu.core_type<tc>, window_params = [{pipeline_mode = #tpu.pipeline_mode<synchronous>, transform_indices = @transform_0, window_bounds = array<i64: 1, 8, 128>}, {pipeline_mode = #tpu.pipeline_mode<synchronous>, transform_indices = @transform_1, window_bounds = array<i64: 1, 8, 128>}]} {
    %c0 = arith.constant 0 : index
    %c0_0 = arith.constant 0 : index
    %c0_1 = arith.constant 0 : index
    %0 = vector.load %arg1[%c0, %c0_0, %c0_1] : memref<1x8x128xf32, #tpu.memory_space<vmem>>, vector<1x8x128xf32>
    %cst = arith.constant 1.000000e+00 : f32
    %1 = vector.broadcast %cst : f32 to vector<1x8x128xf32>
    %2 = arith.addf %0, %1 : vector<1x8x128xf32>
    %c0_2 = arith.constant 0 : index
    %c0_3 = arith.constant 0 : index
    %c0_4 = arith.constant 0 : index
    %3 = vector.load %arg2[%c0_2, %c0_3, %c0_4] : memref<1x8x128xf32, #tpu.memory_space<vmem>>, vector<1x8x128xf32>
    tpu.vector_store %arg2[%c0_2, %c0_3, %c0_4], %2 {strides = array<i32>} : memref<1x8x128xf32, #tpu.memory_space<vmem>>, vector<1x8x128xf32>,
    return
  }
  func.func @transform_0(%arg0: i32) -> (i32, i32, i32) {
    %c0_i32 = arith.constant 0 : i32
    %c0_i32_0 = arith.constant 0 : i32
    %c0_i32_1 = arith.constant 0 : i32
    return %arg0, %c0_i32, %c0_i32_0 : i32, i32, i32
  }
  func.func @transform_1(%arg0: i32) -> (i32, i32, i32) {
    %c0_i32 = arith.constant 0 : i32
    %c0_i32_0 = arith.constant 0 : i32
    %c0_i32_1 = arith.constant 0 : i32
    return %arg0, %c0_i32, %c0_i32_0 : i32, i32, i32
  }
}

module attributes {stable_mosaic.version = 11 : i64} {
  func.func @_se_fused_kernel(%arg0: i32, %arg1: memref<1x4x256xf32, #tpu.memory_space<vmem>>, %arg2: memref<4x4xf32, #tpu.memory_space<vmem>>, %arg3: memref<1x4xf32, #tpu.memory_space<vmem>>, %arg4: memref<4x4xf32, #tpu.memory_space<vmem>>, %arg5: memref<4x1xf32, #tpu.memory_space<vmem>>, %arg6: memref<1x4x256xf32, #tpu.memory_space<vmem>>) attributes {dimension_semantics = [#tpu.dimension_semantics<parallel>], iteration_bounds = array<i64: 2>, scalar_prefetch = 0 : i64, scratch_operands = 0 : i64, tpu.core_type = #tpu.core_type<tc>, window_params = [{transform_indices = @transform_0, window_bounds = array<i64: 1, 4, 256>}, {pipeline_mode = #tpu.pipeline_mode<synchronous>, transform_indices = @transform_1, window_bounds = array<i64: 4, 4>}, {pipeline_mode = #tpu.pipeline_mode<synchronous>, transform_indices = @transform_2, window_bounds = array<i64: 1, 4>}, {pipeline_mode = #tpu.pipeline_mode<synchronous>, transform_indices = @transform_3, window_bounds = array<i64: 4, 4>}, {pipeline_mode = #tpu.pipeline_mode<synchronous>, transform_indices = @transform_4, window_bounds = array<i64: 4, 1>}, {transform_indices = @transform_5, window_bounds = array<i64: 1, 4, 256>}]} {
    %c0 = arith.constant 0 : index
    %c0_0 = arith.constant 0 : index
    %c0_1 = arith.constant 0 : index
    %0 = vector.load %arg1[%c0, %c0_0, %c0_1] : memref<1x4x256xf32, #tpu.memory_space<vmem>>, vector<1x4x256xf32>
    %1 = vector.shape_cast %0 : vector<1x4x256xf32> to vector<4x256xf32>
    %cst = arith.constant dense<0.000000e+00> : vector<4xf32>
    %2 = vector.multi_reduction <add>, %1, %cst [1] : vector<4x256xf32> to vector<4xf32>
    %3 = vector.shape_cast %2 : vector<4xf32> to vector<4x1xf32>
    %cst_2 = arith.constant 2.560000e+02 : f32
    %4 = vector.broadcast %cst_2 : f32 to vector<4x1xf32>
    %5 = arith.divf %3, %4 : vector<4x1xf32>
    %c0_3 = arith.constant 0 : index
    %c0_4 = arith.constant 0 : index
    %6 = vector.load %arg2[%c0_3, %c0_4] : memref<4x4xf32, #tpu.memory_space<vmem>>, vector<4x4xf32>
    %7 = vector.broadcast %5 : vector<4x1xf32> to vector<4x4xf32>
    %8 = arith.mulf %6, %7 : vector<4x4xf32>
    %cst_5 = arith.constant dense<0.000000e+00> : vector<4xf32>
    %9 = vector.multi_reduction <add>, %8, %cst_5 [0] : vector<4x4xf32> to vector<4xf32>
    %10 = vector.shape_cast %9 : vector<4xf32> to vector<1x4xf32>
    %c0_6 = arith.constant 0 : index
    %c0_7 = arith.constant 0 : index
    %11 = vector.load %arg3[%c0_6, %c0_7] : memref<1x4xf32, #tpu.memory_space<vmem>>, vector<1x4xf32>
    %12 = arith.addf %10, %11 : vector<1x4xf32>
    %cst_8 = arith.constant 0.000000e+00 : f32
    %13 = vector.broadcast %cst_8 : f32 to vector<1x4xf32>
    %14 = arith.maximumf %12, %13 : vector<1x4xf32>
    %c0_9 = arith.constant 0 : index
    %c0_10 = arith.constant 0 : index
    %15 = vector.load %arg4[%c0_9, %c0_10] : memref<4x4xf32, #tpu.memory_space<vmem>>, vector<4x4xf32>
    %16 = vector.broadcast %14 : vector<1x4xf32> to vector<4x4xf32>
    %17 = arith.mulf %15, %16 : vector<4x4xf32>
    %cst_11 = arith.constant dense<0.000000e+00> : vector<4xf32>
    %18 = vector.multi_reduction <add>, %17, %cst_11 [1] : vector<4x4xf32> to vector<4xf32>
    %19 = vector.shape_cast %18 : vector<4xf32> to vector<4x1xf32>
    %c0_12 = arith.constant 0 : index
    %c0_13 = arith.constant 0 : index
    %20 = vector.load %arg5[%c0_12, %c0_13] : memref<4x1xf32, #tpu.memory_space<vmem>>, vector<4x1xf32>
    %21 = arith.addf %19, %20 : vector<4x1xf32>
    %22 = arith.negf %21 : vector<4x1xf32>
    %23 = math.exp %22 : vector<4x1xf32>
    %cst_14 = arith.constant 1.000000e+00 : f32
    %24 = vector.broadcast %cst_14 : f32 to vector<4x1xf32>
    %25 = arith.addf %24, %23 : vector<4x1xf32>
    %26 = arith.divf %24, %25 : vector<4x1xf32>
    %c0_15 = arith.constant 0 : index
    %c0_16 = arith.constant 0 : index
    %c0_17 = arith.constant 0 : index
    %27 = vector.load %arg1[%c0_15, %c0_16, %c0_17] : memref<1x4x256xf32, #tpu.memory_space<vmem>>, vector<1x4x256xf32>
    %28 = vector.shape_cast %27 : vector<1x4x256xf32> to vector<4x256xf32>
    %29 = vector.broadcast %26 : vector<4x1xf32> to vector<4x256xf32>
    %30 = arith.mulf %28, %29 : vector<4x256xf32>
    %c0_18 = arith.constant 0 : index
    %c0_19 = arith.constant 0 : index
    %c0_20 = arith.constant 0 : index
    %31 = vector.load %arg6[%c0_18, %c0_19, %c0_20] : memref<1x4x256xf32, #tpu.memory_space<vmem>>, vector<1x4x256xf32>
    %32 = vector.shape_cast %31 : vector<1x4x256xf32> to vector<4x256xf32>
    %33 = vector.shape_cast %30 : vector<4x256xf32> to vector<1x4x256xf32>
    tpu.vector_store %arg6[%c0_18, %c0_19, %c0_20], %33 {strides = array<i32>} : memref<1x4x256xf32, #tpu.memory_space<vmem>>, vector<1x4x256xf32>,
    return
  }
  func.func @transform_0(%arg0: i32) -> (i32, i32, i32) {
    %c0_i32 = arith.constant 0 : i32
    %c0_i32_0 = arith.constant 0 : i32
    %c0_i32_1 = arith.constant 0 : i32
    return %arg0, %c0_i32, %c0_i32_0 : i32, i32, i32
  }
  func.func @transform_1(%arg0: i32) -> (i32, i32) {
    %c0_i32 = arith.constant 0 : i32
    %c0_i32_0 = arith.constant 0 : i32
    %c0_i32_1 = arith.constant 0 : i32
    return %c0_i32, %c0_i32_0 : i32, i32
  }
  func.func @transform_2(%arg0: i32) -> (i32, i32) {
    %c0_i32 = arith.constant 0 : i32
    %c0_i32_0 = arith.constant 0 : i32
    %c0_i32_1 = arith.constant 0 : i32
    return %c0_i32, %c0_i32_0 : i32, i32
  }
  func.func @transform_3(%arg0: i32) -> (i32, i32) {
    %c0_i32 = arith.constant 0 : i32
    %c0_i32_0 = arith.constant 0 : i32
    %c0_i32_1 = arith.constant 0 : i32
    return %c0_i32, %c0_i32_0 : i32, i32
  }
  func.func @transform_4(%arg0: i32) -> (i32, i32) {
    %c0_i32 = arith.constant 0 : i32
    %c0_i32_0 = arith.constant 0 : i32
    %c0_i32_1 = arith.constant 0 : i32
    return %c0_i32, %c0_i32_0 : i32, i32
  }
  func.func @transform_5(%arg0: i32) -> (i32, i32, i32) {
    %c0_i32 = arith.constant 0 : i32
    %c0_i32_0 = arith.constant 0 : i32
    %c0_i32_1 = arith.constant 0 : i32
    return %arg0, %c0_i32, %c0_i32_0 : i32, i32, i32
  }
}

</mosaic_0001>

<llo_original>
// kernel: tpu_custom_call.1
$region0: #{tpu_custom_call.1}
  #allocation0 [shape = 'u32[]', space=smem, size = 0x4, offset = 0x4, fixed_abs, tag = 'smem constant byte address 0x4 - core index']
  #allocation1 [shape = 'u32[144,128]{1,0:T(1,128)}', space=vmem, size = 0x12000, scoped, tag = 'internal scratch']
  %s0 = inlined_call_operand.hbm [shape: f32[4,8,128], index: 0, kind: input, shape index: {}]
  %s1 = inlined_call_operand.hbm [shape: f32[4,8,128], index: 1, kind: output, shape index: {}]
  %s2 = sld [smem:[#allocation0]]
  $region41: #{tpu_custom_call.1} parent=0
    _
  %s4 = ssub.s32 1, %s2
  %s5 = scalar_select 0, %s4, %s2
  $region1: #{tpu_custom_call.1} parent=0
    #allocation2 [shape = 'u8[4096]{0}', space=vmem, size = 0x1000, scoped, tag = 'input window, operand 0, single buffered']
    #allocation3 [shape = 's32[2]{0}', space=sflag, size = 0x8, scoped, tag = 'scoped memory for tpu_custom_call.1']
    #allocation4 [shape = 's32[2]{0}', space=sflag, size = 0x8, scoped, tag = 'scoped memory for tpu_custom_call.1']
    #allocation5 [shape = 'u8[4096]{0}', space=vmem, size = 0x1000, scoped, tag = 'output window, operand 0, single buffered']
    %6 = vsyncpa [#allocation3], 0
    %7 = vsyncpa [#allocation4], 0
    loop: start=0, step=1, limit=6
    $region2: #{tpu_custom_call.1} parent=1 // loop_pre_header
      _
    $region3: #{tpu_custom_call.1} parent=1 // loop_header
      %s9 = sphi 0, %s13
      %p10 = scmp.ge.s32.totalorder %s9, 6
      %s19 = sphi 0, %s21
      %s22 = sphi 0, %s19
      %s23 = sphi 0, %s22
      %s39 = sphi 0, %s23
      %s45 = sphi 0, %s47
      %s48 = sphi 0, %s45
      %s49 = sphi 0, %s48
      %s65 = sphi 0, %s49
    $region4: #{tpu_custom_call.1} parent=1 // loop_header_branch
      %12 = sbr.rel (%p10) target = $region8
    $region5: #{tpu_custom_call.1} parent=1 // loop_body
      %s14 = ssub.s32 %s9, 1
      %s15 = ssub.s32 %s9, 2
      %s16 = sadd.s32 %s9, 1
      %s17 = ssub.s32 %s9, %s16
      %p18 = scmp.eq.s32.totalorder %s17, 0
      %s20 = sadd.s32 %s19, 1
      %s21 = scalar_select %p18, %s19, %s20
      %p24 = pneg %p18
      %p25 = scmp.eq.s32.totalorder %s9, 3
      %p26 = por %p24, %p25
      %p27 = scmp.ne.s32.totalorder %s19, %s22
      %p28 = scmp.eq.s32.totalorder %s9, 0
      %p29 = por %p27, %p28
      %p30 = scmp.ne.s32.totalorder %s19, %s22
      %p31 = scmp.eq.s32.totalorder %s14, 3
      %p32 = por %p30, %p31
      %p33 = scmp.ne.s32.totalorder %s22, %s23
      %p34 = scmp.eq.s32.totalorder %s14, 0
      %p35 = por %p33, %p34
      %p36 = scmp.ne.s32.totalorder %s22, %s23
      %p37 = scmp.eq.s32.totalorder %s15, 3
      %p38 = por %p36, %p37
      %p40 = scmp.ne.s32.totalorder %s23, %s39
      %p41 = scmp.eq.s32.totalorder %s15, 0
      %p42 = por %p40, %p41
      %s43 = ssub.s32 %s9, %s16
      %p44 = scmp.eq.s32.totalorder %s43, 0
      %s46 = sadd.s32 %s45, 1
      %s47 = scalar_select %p44, %s45, %s46
      %p50 = pneg %p44
      %p51 = scmp.eq.s32.totalorder %s9, 3
      %p52 = por %p50, %p51
      %p53 = scmp.ne.s32.totalorder %s45, %s48
      %p54 = scmp.eq.s32.totalorder %s9, 0
      %p55 = por %p53, %p54
      %p56 = scmp.ne.s32.totalorder %s45, %s48
      %p57 = scmp.eq.s32.totalorder %s14, 3
      %p58 = por %p56, %p57
      %p59 = scmp.ne.s32.totalorder %s48, %s49
      %p60 = scmp.eq.s32.totalorder %s14, 0
      %p61 = por %p59, %p60
      %p62 = scmp.ne.s32.totalorder %s48, %s49
      %p63 = scmp.eq.s32.totalorder %s15, 3
      %p64 = por %p62, %p63
      %p66 = scmp.ne.s32.totalorder %s49, %s65
      %p67 = scmp.eq.s32.totalorder %s15, 0
      %p68 = por %p66, %p67
      %p69 = scmp.le.s32.totalorder 1, %s9
      %p70 = scmp.lt.s32.totalorder %s9, 5
      %p71 = pnand %p69, %p70
      %p72 = pneg %p71
      // Predicated region
      $region9: #{tpu_custom_call.1} parent=5 // pred_check
        _
      $region10: #{tpu_custom_call.1} parent=5 // pred_check_branch
        %74 = sbr.rel (%p71) target = $region12
      $region11: #{tpu_custom_call.1} parent=5 // pred_region
        %s75 = ssub.s32 %s9, 1
        // Predicated region
        $region13: #{tpu_custom_call.1} parent=11 // pred_check
          %p76 = pneg %p35
        $region14: #{tpu_custom_call.1} parent=11 // pred_check_branch
          %78 = sbr.rel (%p76) target = $region16
        $region15: #{tpu_custom_call.1} parent=11 // pred_region
          %s80 = ssub.s32 128, 128
          %81 = vsyncadd [#allocation3], %s80
          %s82 = smul.addr %s14, 128
          %s83 = scalar_lea.hbm %s0, %s82
          %s85 = sshll.u32 [#allocation2], 4
          %s86 = int_to_ptr.vmem [resolvable:$true] %s85
          %88 = dma.hbm_to_vmem [thread:$0]  %s83, 128, %s86, [#allocation3]
        $region16: #{tpu_custom_call.1} parent=11 // pred_fallthru
          _
      $region12: #{tpu_custom_call.1} parent=5 // pred_fallthru
        _
      %p89 = scmp.lt.s32.totalorder %s9, 4
      // Predicated region
      $region17: #{tpu_custom_call.1} parent=5 // pred_check
        %p90 = pneg %p89
      $region18: #{tpu_custom_call.1} parent=5 // pred_check_branch
        %92 = sbr.rel (%p90) target = $region20
      $region19: #{tpu_custom_call.1} parent=5 // pred_region
        _
      $region20: #{tpu_custom_call.1} parent=5 // pred_fallthru
        _
      %p93 = scmp.le.s32.totalorder 1, %s9
      %p94 = scmp.lt.s32.totalorder %s9, 5
      %p95 = pnand %p93, %p94
      %p96 = pneg %p95
      // Predicated region
      $region21: #{tpu_custom_call.1} parent=5 // pred_check
        _
      $region22: #{tpu_custom_call.1} parent=5 // pred_check_branch
        %98 = sbr.rel (%p95) target = $region24
      $region23: #{tpu_custom_call.1} parent=5 // pred_region
        %s99 = ssub.s32 %s9, 1
        // Predicated region
        $region25: #{tpu_custom_call.1} parent=23 // pred_check
          %p100 = pneg %p35
        $region26: #{tpu_custom_call.1} parent=23 // pred_check_branch
          %102 = sbr.rel (%p100) target = $region28
        $region27: #{tpu_custom_call.1} parent=23 // pred_region
          %103 = dma.done [#allocation3], 128
        $region28: #{tpu_custom_call.1} parent=23 // pred_fallthru
          _
        %p104 = pneg %p35
        %p105 = pneg %p32
        %p106 = pneg %p61
        %p107 = pneg %p58
        %v108 = vld [vmem:[#allocation2] sm:$0xff]
        %v109 = vadd.f32 %v108, 1.0
        %110 = vst [vmem:[#allocation5] sm:$0xff] %v109
        // Predicated region
        $region29: #{tpu_custom_call.1} parent=23 // pred_check
          %p111 = pneg %p58
        $region30: #{tpu_custom_call.1} parent=23 // pred_check_branch
          %113 = sbr.rel (%p111) target = $region32
        $region31: #{tpu_custom_call.1} parent=23 // pred_region
          %s115 = ssub.s32 128, 128
          %116 = vsyncadd [#allocation4], %s115
          %s117 = smul.addr %s14, 128
          %s118 = scalar_lea.hbm %s1, %s117
          %s120 = sshll.u32 [#allocation5], 4
          %s121 = int_to_ptr.vmem [resolvable:$true] %s120
          %123 = dma.vmem_to_hbm [thread:$0]  %s121, 128, %s118, [#allocation4]
        $region32: #{tpu_custom_call.1} parent=23 // pred_fallthru
          _
        // Predicated region
        $region33: #{tpu_custom_call.1} parent=23 // pred_check
          %p124 = pneg %p58
        $region34: #{tpu_custom_call.1} parent=23 // pred_check_branch
          %126 = sbr.rel (%p124) target = $region36
        $region35: #{tpu_custom_call.1} parent=23 // pred_region
          %127 = dma.done [#allocation4], 128
        $region36: #{tpu_custom_call.1} parent=23 // pred_fallthru
          _
      $region24: #{tpu_custom_call.1} parent=5 // pred_fallthru
        _
      %p128 = scmp.le.s32.totalorder 2, %s9
      // Predicated region
      $region37: #{tpu_custom_call.1} parent=5 // pred_check
        %p129 = pneg %p128
      $region38: #{tpu_custom_call.1} parent=5 // pred_check_branch
        %131 = sbr.rel (%p129) target = $region40
      $region39: #{tpu_custom_call.1} parent=5 // pred_region
        %s132 = ssub.s32 %s9, 2
      $region40: #{tpu_custom_call.1} parent=5 // pred_fallthru
        _
    $region6: #{tpu_custom_call.1} parent=1 // loop_footer
      %s13 = sadd.s32 1, %s9
    $region7: #{tpu_custom_call.1} parent=1 // loop_footer_branch
      %8 = sbr.rel target = $region3
    $region8: #{tpu_custom_call.1} parent=1 // loop_exit
      _
    %133 = vsyncpa [#allocation3], 1
    %s134 = scalar_lea.sflag [#allocation3], 1
    %135 = vsyncpa %s134, 1
    %136 = vsyncpa [#allocation4], 1
    %s137 = scalar_lea.sflag [#allocation4], 1
    %138 = vsyncpa %s137, 1

// kernel: tpu_custom_call.1
$region0: #{tpu_custom_call.1}
  #allocation0 [shape = 'u32[]', space=smem, size = 0x4, offset = 0x4, fixed_abs, tag = 'smem constant byte address 0x4 - core index']
  #allocation1 [shape = 'u32[144,128]{1,0:T(1,128)}', space=vmem, size = 0x12000, scoped, tag = 'internal scratch']
  %s0 = inlined_call_operand.hbm [shape: f32[2,4,256], index: 0, kind: input, shape index: {}]
  %s1 = inlined_call_operand.vmem [shape: f32[4,4], index: 1, kind: input, shape index: {}]
  %s2 = inlined_call_operand.vmem [shape: f32[1,4], index: 2, kind: input, shape index: {}]
  %s3 = inlined_call_operand.vmem [shape: f32[4,4], index: 3, kind: input, shape index: {}]
  %s4 = inlined_call_operand.vmem [shape: f32[4,1], index: 4, kind: input, shape index: {}]
  %s5 = inlined_call_operand.hbm [shape: f32[2,4,256], index: 5, kind: output, shape index: {}]
  %s6 = sld [smem:[#allocation0]]
  $region57: #{tpu_custom_call.1} parent=0
    _
  %s8 = ssub.s32 1, %s6
  %s9 = scalar_select 0, %s8, %s6
  $region1: #{tpu_custom_call.1} parent=0
    #allocation2 [shape = 'u8[8192]{0}', space=vmem, size = 0x2000, scoped, tag = 'input window, operand 0']
    #allocation3 [shape = 's32[2]{0}', space=sflag, size = 0x8, scoped, tag = 'scoped memory for tpu_custom_call.1']
    #allocation4 [shape = 's32[2]{0}', space=sflag, size = 0x8, scoped, tag = 'scoped memory for tpu_custom_call.1']
    #allocation5 [shape = 'u8[8192]{0}', space=vmem, size = 0x2000, scoped, tag = 'output window, operand 0']
    %10 = vsyncpa [#allocation3], 0
    %s11 = scalar_lea.sflag [#allocation3], 1
    %12 = vsyncpa %s11, 0
    %13 = vsyncpa [#allocation4], 0
    %s14 = scalar_lea.sflag [#allocation4], 1
    %15 = vsyncpa %s14, 0
    loop: start=0, step=1, limit=4
    $region2: #{tpu_custom_call.1} parent=1 // loop_pre_header
      _
    $region3: #{tpu_custom_call.1} parent=1 // loop_header
      %s17 = sphi 0, %s21
      %p18 = scmp.ge.s32.totalorder %s17, 4
      %s27 = sphi 0, %s29
      %s30 = sphi 0, %s27
      %s31 = sphi 0, %s30
      %s47 = sphi 0, %s31
      %s51 = sphi 0, %s51
      %s53 = sphi 0, %s51
      %s54 = sphi 0, %s53
      %s68 = sphi 0, %s54
      %s72 = sphi 0, %s72
      %s74 = sphi 0, %s72
      %s75 = sphi 0, %s74
      %s89 = sphi 0, %s75
      %s93 = sphi 0, %s93
      %s95 = sphi 0, %s93
      %s96 = sphi 0, %s95
      %s110 = sphi 0, %s96
      %s114 = sphi 0, %s114
      %s116 = sphi 0, %s114
      %s117 = sphi 0, %s116
      %s131 = sphi 0, %s117
      %s137 = sphi 0, %s139
      %s140 = sphi 0, %s137
      %s141 = sphi 0, %s140
      %s157 = sphi 0, %s141
    $region4: #{tpu_custom_call.1} parent=1 // loop_header_branch
      %20 = sbr.rel (%p18) target = $region8
    $region5: #{tpu_custom_call.1} parent=1 // loop_body
      %s22 = ssub.s32 %s17, 1
      %s23 = ssub.s32 %s17, 2
      %s24 = sadd.s32 %s17, 1
      %s25 = ssub.s32 %s17, %s24
      %p26 = scmp.eq.s32.totalorder %s25, 0
      %s28 = sadd.s32 %s27, 1
      %s29 = scalar_select %p26, %s27, %s28
      %p32 = pneg %p26
      %p33 = scmp.eq.s32.totalorder %s17, 1
      %p34 = por %p32, %p33
      %p35 = scmp.ne.s32.totalorder %s27, %s30
      %p36 = scmp.eq.s32.totalorder %s17, 0
      %p37 = por %p35, %p36
      %p38 = scmp.ne.s32.totalorder %s27, %s30
      %p39 = scmp.eq.s32.totalorder %s22, 1
      %p40 = por %p38, %p39
      %p41 = scmp.ne.s32.totalorder %s30, %s31
      %p42 = scmp.eq.s32.totalorder %s22, 0
      %p43 = por %p41, %p42
      %p44 = scmp.ne.s32.totalorder %s30, %s31
      %p45 = scmp.eq.s32.totalorder %s23, 1
      %p46 = por %p44, %p45
      %p48 = scmp.ne.s32.totalorder %s31, %s47
      %p49 = scmp.eq.s32.totalorder %s23, 0
      %p50 = por %p48, %p49
      %s52 = sadd.s32 %s51, 1
      %p55 = scmp.eq.s32.totalorder %s17, 1
      %p56 = scmp.ne.s32.totalorder %s51, %s53
      %p57 = scmp.eq.s32.totalorder %s17, 0
      %p58 = por %p56, %p57
      %p59 = scmp.ne.s32.totalorder %s51, %s53
      %p60 = scmp.eq.s32.totalorder %s22, 1
      %p61 = por %p59, %p60
      %p62 = scmp.ne.s32.totalorder %s53, %s54
      %p63 = scmp.eq.s32.totalorder %s22, 0
      %p64 = por %p62, %p63
      %p65 = scmp.ne.s32.totalorder %s53, %s54
      %p66 = scmp.eq.s32.totalorder %s23, 1
      %p67 = por %p65, %p66
      %p69 = scmp.ne.s32.totalorder %s54, %s68
      %p70 = scmp.eq.s32.totalorder %s23, 0
      %p71 = por %p69, %p70
      %s73 = sadd.s32 %s72, 1
      %p76 = scmp.eq.s32.totalorder %s17, 1
      %p77 = scmp.ne.s32.totalorder %s72, %s74
      %p78 = scmp.eq.s32.totalorder %s17, 0
      %p79 = por %p77, %p78
      %p80 = scmp.ne.s32.totalorder %s72, %s74
      %p81 = scmp.eq.s32.totalorder %s22, 1
      %p82 = por %p80, %p81
      %p83 = scmp.ne.s32.totalorder %s74, %s75
      %p84 = scmp.eq.s32.totalorder %s22, 0
      %p85 = por %p83, %p84
      %p86 = scmp.ne.s32.totalorder %s74, %s75
      %p87 = scmp.eq.s32.totalorder %s23, 1
      %p88 = por %p86, %p87
      %p90 = scmp.ne.s32.totalorder %s75, %s89
      %p91 = scmp.eq.s32.totalorder %s23, 0
      %p92 = por %p90, %p91
      %s94 = sadd.s32 %s93, 1
      %p97 = scmp.eq.s32.totalorder %s17, 1
      %p98 = scmp.ne.s32.totalorder %s93, %s95
      %p99 = scmp.eq.s32.totalorder %s17, 0
      %p100 = por %p98, %p99
      %p101 = scmp.ne.s32.totalorder %s93, %s95
      %p102 = scmp.eq.s32.totalorder %s22, 1
      %p103 = por %p101, %p102
      %p104 = scmp.ne.s32.totalorder %s95, %s96
      %p105 = scmp.eq.s32.totalorder %s22, 0
      %p106 = por %p104, %p105
      %p107 = scmp.ne.s32.totalorder %s95, %s96
      %p108 = scmp.eq.s32.totalorder %s23, 1
      %p109 = por %p107, %p108
      %p111 = scmp.ne.s32.totalorder %s96, %s110
      %p112 = scmp.eq.s32.totalorder %s23, 0
      %p113 = por %p111, %p112
      %s115 = sadd.s32 %s114, 1
      %p118 = scmp.eq.s32.totalorder %s17, 1
      %p119 = scmp.ne.s32.totalorder %s114, %s116
      %p120 = scmp.eq.s32.totalorder %s17, 0
      %p121 = por %p119, %p120
      %p122 = scmp.ne.s32.totalorder %s114, %s116
      %p123 = scmp.eq.s32.totalorder %s22, 1
      %p124 = por %p122, %p123
      %p125 = scmp.ne.s32.totalorder %s116, %s117
      %p126 = scmp.eq.s32.totalorder %s22, 0
      %p127 = por %p125, %p126
      %p128 = scmp.ne.s32.totalorder %s116, %s117
      %p129 = scmp.eq.s32.totalorder %s23, 1
      %p130 = por %p128, %p129
      %p132 = scmp.ne.s32.totalorder %s117, %s131
      %p133 = scmp.eq.s32.totalorder %s23, 0
      %p134 = por %p132, %p133
      %s135 = ssub.s32 %s17, %s24
      %p136 = scmp.eq.s32.totalorder %s135, 0
      %s138 = sadd.s32 %s137, 1
      %s139 = scalar_select %p136, %s137, %s138
      %p142 = pneg %p136
      %p143 = scmp.eq.s32.totalorder %s17, 1
      %p144 = por %p142, %p143
      %p145 = scmp.ne.s32.totalorder %s137, %s140
      %p146 = scmp.eq.s32.totalorder %s17, 0
      %p147 = por %p145, %p146
      %p148 = scmp.ne.s32.totalorder %s137, %s140
      %p149 = scmp.eq.s32.totalorder %s22, 1
      %p150 = por %p148, %p149
      %p151 = scmp.ne.s32.totalorder %s140, %s141
      %p152 = scmp.eq.s32.totalorder %s22, 0
      %p153 = por %p151, %p152
      %p154 = scmp.ne.s32.totalorder %s140, %s141
      %p155 = scmp.eq.s32.totalorder %s23, 1
      %p156 = por %p154, %p155
      %p158 = scmp.ne.s32.totalorder %s141, %s157
      %p159 = scmp.eq.s32.totalorder %s23, 0
      %p160 = por %p158, %p159
      %p161 = scmp.le.s32.totalorder 1, %s17
      %p162 = scmp.lt.s32.totalorder %s17, 3
      %p163 = pnand %p161, %p162
      %p164 = pneg %p163
      // Predicated region
      $region9: #{tpu_custom_call.1} parent=5 // pred_check
        _
      $region10: #{tpu_custom_call.1} parent=5 // pred_check_branch
        %166 = sbr.rel (%p163) target = $region12
      $region11: #{tpu_custom_call.1} parent=5 // pred_region
        %s167 = ssub.s32 %s17, 1
        // Predicated region
        $region13: #{tpu_custom_call.1} parent=11 // pred_check
          %p168 = pneg %p64
        $region14: #{tpu_custom_call.1} parent=11 // pred_check_branch
          %170 = sbr.rel (%p168) target = $region16
        $region15: #{tpu_custom_call.1} parent=11 // pred_region
          _
        $region16: #{tpu_custom_call.1} parent=11 // pred_fallthru
          _
        // Predicated region
        $region17: #{tpu_custom_call.1} parent=11 // pred_check
          %p171 = pneg %p85
        $region18: #{tpu_custom_call.1} parent=11 // pred_check_branch
          %173 = sbr.rel (%p171) target = $region20
        $region19: #{tpu_custom_call.1} parent=11 // pred_region
          _
        $region20: #{tpu_custom_call.1} parent=11 // pred_fallthru
          _
        // Predicated region
        $region21: #{tpu_custom_call.1} parent=11 // pred_check
          %p174 = pneg %p106
        $region22: #{tpu_custom_call.1} parent=11 // pred_check_branch
          %176 = sbr.rel (%p174) target = $region24
        $region23: #{tpu_custom_call.1} parent=11 // pred_region
          _
        $region24: #{tpu_custom_call.1} parent=11 // pred_fallthru
          _
        // Predicated region
        $region25: #{tpu_custom_call.1} parent=11 // pred_check
          %p177 = pneg %p127
        $region26: #{tpu_custom_call.1} parent=11 // pred_check_branch
          %179 = sbr.rel (%p177) target = $region28
        $region27: #{tpu_custom_call.1} parent=11 // pred_region
          _
        $region28: #{tpu_custom_call.1} parent=11 // pred_fallthru
          _
      $region12: #{tpu_custom_call.1} parent=5 // pred_fallthru
        _
      %p180 = scmp.lt.s32.totalorder %s17, 2
      // Predicated region
      $region29: #{tpu_custom_call.1} parent=5 // pred_check
        %p181 = pneg %p180
      $region30: #{tpu_custom_call.1} parent=5 // pred_check_branch
        %183 = sbr.rel (%p181) target = $region32
      $region31: #{tpu_custom_call.1} parent=5 // pred_region
        // Predicated region
        $region33: #{tpu_custom_call.1} parent=31 // pred_check
          %p184 = pneg %p37
        $region34: #{tpu_custom_call.1} parent=31 // pred_check_branch
          %186 = sbr.rel (%p184) target = $region36
        $region35: #{tpu_custom_call.1} parent=31 // pred_region
          %s187 = sand.u32 %s27, 1
          %s188 = scalar_lea.sflag [#allocation3], %s187
          %s189 = sand.u32 %s27, 1
          %s190 = smul.addr %s189, 8
          %s191 = scalar_lea.vmem [#allocation2], %s190
          %s193 = ssub.s32 128, 128
          %194 = vsyncadd %s188, %s193
          %s195 = smul.addr %s17, 2
          %s196 = smul.addr %s195, 64
          %s197 = scalar_lea.hbm %s0, %s196
          %s199 = sshll.u32 %s191, 4
          %s200 = int_to_ptr.vmem [resolvable:$true] %s199
          %202 = dma.hbm_to_vmem [thread:$0]  %s197, 128, %s200, %s188
        $region36: #{tpu_custom_call.1} parent=31 // pred_fallthru
          _
      $region32: #{tpu_custom_call.1} parent=5 // pred_fallthru
        _
      %p203 = scmp.le.s32.totalorder 1, %s17
      %p204 = scmp.lt.s32.totalorder %s17, 3
      %p205 = pnand %p203, %p204
      %p206 = pneg %p205
      // Predicated region
      $region37: #{tpu_custom_call.1} parent=5 // pred_check
        _
      $region38: #{tpu_custom_call.1} parent=5 // pred_check_branch
        %208 = sbr.rel (%p205) target = $region40
      $region39: #{tpu_custom_call.1} parent=5 // pred_region
        %s209 = ssub.s32 %s17, 1
        %s210 = sand.u32 %s30, 1
        %s211 = scalar_lea.sflag [#allocation3], %s210
        %s212 = sand.u32 %s30, 1
        %s213 = smul.addr %s212, 8
        %s214 = scalar_lea.vmem [#allocation2], %s213
        // Predicated region
        $region41: #{tpu_custom_call.1} parent=39 // pred_check
          %p215 = pneg %p43
        $region42: #{tpu_custom_call.1} parent=39 // pred_check_branch
          %217 = sbr.rel (%p215) target = $region44
        $region43: #{tpu_custom_call.1} parent=39 // pred_region
          %218 = dma.done %s211, 128
        $region44: #{tpu_custom_call.1} parent=39 // pred_fallthru
          _
        %s219 = sand.u32 %s30, 1
        %s220 = scalar_lea.sflag [#allocation3], %s219
        %s221 = sand.u32 %s30, 1
        %s222 = smul.addr %s221, 8
        %s223 = scalar_lea.vmem [#allocation2], %s222
        %p224 = pneg %p43
        %p225 = pneg %p40
        %p226 = pneg %p64
        %p227 = pneg %p61
        %p228 = pneg %p85
        %p229 = pneg %p82
        %p230 = pneg %p106
        %p231 = pneg %p103
        %p232 = pneg %p127
        %p233 = pneg %p124
        %p234 = pneg %p153
        %p235 = pneg %p150
        %s236 = sand.u32 %s140, 1
        %s237 = scalar_lea.sflag [#allocation4], %s236
        %s238 = sand.u32 %s140, 1
        %s239 = smul.addr %s238, 8
        %s240 = scalar_lea.vmem [#allocation5], %s239
        %v241 = vld [vmem:[%s214] sm:$0xff]
        %v243 = vcombine.high %v241, %v241
        %vm245 = vcmask 1043456
        %v246 = vsel %vm245, %v241, 0.0
        %v247 = vsel %vm245, %v243, 0.0
        %v248 = vadd.f32 %v246, %v247
        %249 = vadd.xlane.f32.xlu0 %v248
        %v250 = vpop.xlane.xlu0 %249
        %v251 = vrcp.pop 256.0
        %v252 = vmul.f32 %v250, %v251
        %v253 = vld [vmem:[%s1] sm:$0xf]
        %v254 = vmul.f32 %v253, %v252
        %vm255 = vcmask 27648
        %v256 = vsel %vm255, %v254, 0.0
        %v257 = vrot.slane %v256, 4
        %v258 = vadd.f32 %v256, %v257
        %v259 = vrot.slane %v258, 2
        %v260 = vadd.f32 %v258, %v259
        %v261 = vrot.slane %v260, 1
        %v262 = vadd.f32 %v260, %v261
        %v263 = vld [vmem:[%s2] sm:$0x1]
        %v264 = vadd.f32 %v262, %v263
        %v265 = vmax.f32 %v264, 0.0
        %v266 = vld [vmem:[%s3] sm:$0xf]
        %v267 = vlaneseq
        %v268 = vshrl.u32 %v267, 7
        %v269 = vsub.s32 0, %v268
        %v270 = vrot.slane %v265, %v269
        %v271 = vmul.f32 %v266, %v270
        %v272 = vsel %vm255, %v271, 0.0
        %273 = vadd.xlane.f32.xlu0 %v272
        %v274 = vpop.xlane.xlu0 %273
        %v275 = vld [vmem:[%s4] sm:$0xf]
        %v276 = vadd.f32 %v274, %v275
        %v277 = vxor.u32 %v276, 2147483648
        %v278 = vmul.f32 %v277, 1.442695
        %v279 = vpow.pop %v278
        %v280 = vadd.f32 %v279, 1.0
        %v281 = vrcp.pop %v280
        %v282 = vmul.f32 1.0, %v281
        %284 = vset.pattern.permute.xlu0 0
        %285 = vperm.xlu0 %284, %v282
        %v286 = vpop.permute.xlu0 %285
        %v288 = vunpack.c.l.s4 839922192
        %v289 = vunpack.c.0.s8 %v288
        %v290 = vlaneseq
        %v291 = vshrl.u32 %v290, 7
        %v292 = vsub.s32 %v289, %v291
        %v293 = vrot.slane %v286, %v292
        %v295 = vmul.f32 %v241, %v293
        %296 = vst [vmem:[%s240] sm:$0xff] %v295
        %s297 = sand.u32 %s140, 1
        %s298 = scalar_lea.sflag [#allocation4], %s297
        %s299 = sand.u32 %s140, 1
        %s300 = smul.addr %s299, 8
        %s301 = scalar_lea.vmem [#allocation5], %s300
        // Predicated region
        $region45: #{tpu_custom_call.1} parent=39 // pred_check
          %p302 = pneg %p150
        $region46: #{tpu_custom_call.1} parent=39 // pred_check_branch
          %304 = sbr.rel (%p302) target = $region48
        $region47: #{tpu_custom_call.1} parent=39 // pred_region
          %s306 = ssub.s32 128, 128
          %307 = vsyncadd %s298, %s306
          %s308 = smul.addr %s22, 2
          %s309 = smul.addr %s308, 64
          %s310 = scalar_lea.hbm %s5, %s309
          %s312 = sshll.u32 %s301, 4
          %s313 = int_to_ptr.vmem [resolvable:$true] %s312
          %315 = dma.vmem_to_hbm [thread:$0]  %s313, 128, %s310, %s298
        $region48: #{tpu_custom_call.1} parent=39 // pred_fallthru
          _
      $region40: #{tpu_custom_call.1} parent=5 // pred_fallthru
        _
      %p316 = scmp.le.s32.totalorder 2, %s17
      // Predicated region
      $region49: #{tpu_custom_call.1} parent=5 // pred_check
        %p317 = pneg %p316
      $region50: #{tpu_custom_call.1} parent=5 // pred_check_branch
        %319 = sbr.rel (%p317) target = $region52
      $region51: #{tpu_custom_call.1} parent=5 // pred_region
        %s320 = ssub.s32 %s17, 2
        // Predicated region
        $region53: #{tpu_custom_call.1} parent=51 // pred_check
          %p321 = pneg %p156
        $region54: #{tpu_custom_call.1} parent=51 // pred_check_branch
          %323 = sbr.rel (%p321) target = $region56
        $region55: #{tpu_custom_call.1} parent=51 // pred_region
          %s324 = sand.u32 %s141, 1
          %s325 = scalar_lea.sflag [#allocation4], %s324
          %s326 = sand.u32 %s141, 1
          %s327 = smul.addr %s326, 8
          %s328 = scalar_lea.vmem [#allocation5], %s327
          %329 = dma.done %s325, 128
        $region56: #{tpu_custom_call.1} parent=51 // pred_fallthru
          _
      $region52: #{tpu_custom_call.1} parent=5 // pred_fallthru
        _
    $region6: #{tpu_custom_call.1} parent=1 // loop_footer
      %s21 = sadd.s32 1, %s17
    $region7: #{tpu_custom_call.1} parent=1 // loop_footer_branch
      %16 = sbr.rel target = $region3
    $region8: #{tpu_custom_call.1} parent=1 // loop_exit
      _
    %330 = vsyncpa [#allocation3], 1
    %s331 = scalar_lea.sflag [#allocation3], 1
    %332 = vsyncpa %s331, 1
    %333 = vsyncpa [#allocation4], 1
    %s334 = scalar_lea.sflag [#allocation4], 1
    %335 = vsyncpa %s334, 1

</llo_original>
